<compile_context>
chip_gen: v5e
topology: v5e:2x2
jax: 0.10.0
libtpu: 0.0.40
codegen_flags: <defaults>
</compile_context>

<pallas_src>
import functools

import jax
import jax.numpy as jnp
from jax.experimental import pallas as pl
from jax.experimental.pallas import tpu as pltpu


def _round_up(x, m):
    return ((x + m - 1) // m) * m


# ----------------------------------------------------------------------------
# Pallas kernel: patch projection = matmul + bias
#   p_ref : (tm, K_pad)      bf16   flattened patch pixels (zero-padded K)
#   w_ref : (K_pad, D_pad)   bf16   conv weight reshaped/transposed (padded)
#   b_ref : (1, D_pad)       f32
#   o_ref : (tm, D_pad)      bf16 (default) / f32
# ----------------------------------------------------------------------------
def _patch_proj_kernel(p_ref, w_ref, b_ref, o_ref):
    acc = jnp.dot(p_ref[...], w_ref[...], preferred_element_type=jnp.float32)
    o_ref[...] = (acc + b_ref[...]).astype(o_ref.dtype)


def _plan_tiles(M, K_pad, D_pad, *, in_bytes, out_bytes,
                vmem_budget=20 * 1024 * 1024, align=256, t_max=1024):
    """Pick row tile `tm` (multiple of `align` unless M is small) + VMEM limit."""
    weight_bytes = 2 * K_pad * D_pad * in_bytes    # weight is double-buffered too
    bias_bytes = 2 * D_pad * 4                     # double-buffered f32 bias
    fixed = weight_bytes + bias_bytes
    per_row = 2 * K_pad * in_bytes + 2 * D_pad * out_bytes  # dbl-buffered in/out

    if M <= align:
        tm = M                                     # single full-extent block
    else:
        tm = max(vmem_budget - fixed, 0) // per_row
        tm = min(tm, t_max, M)
        tm = max(align, (tm // align) * align)
        if M >= 2 * align:
            # ensure >= 2 grid blocks so the "parallel" axis can shard across
            # v7x's two TensorCores (free on 1-TC v5e/v6e)
            tm = min(tm, _round_up(-(-M // 2), align))

    need = fixed + per_row * tm + 4 * 1024 * 1024  # + pipeline/scratch margin
    vmem_limit = max(32 * 1024 * 1024, int(need))
    return int(tm), int(vmem_limit)


def _patch_proj(patches, w_mat, b_mat, *, tm, vmem_limit, out_dtype):
    M, K_pad = patches.shape
    _, D_pad = w_mat.shape
    grid_m = pl.cdiv(M, tm)   # tail block (if any) is masked by Pallas
    return pl.pallas_call(
        _patch_proj_kernel,
        out_shape=jax.ShapeDtypeStruct((M, D_pad), out_dtype),
        grid_spec=pltpu.PrefetchScalarGridSpec(
            num_scalar_prefetch=0,
            grid=(grid_m,),
            in_specs=[
                pl.BlockSpec((tm, K_pad), lambda i: (i, 0)),     # streamed rows
                pl.BlockSpec((K_pad, D_pad), lambda i: (0, 0)),  # VMEM-resident
                pl.BlockSpec((1, D_pad), lambda i: (0, 0)),      # VMEM-resident
            ],
            out_specs=pl.BlockSpec((tm, D_pad), lambda i: (i, 0)),
        ),
        compiler_params=pltpu.CompilerParams(
            dimension_semantics=("parallel",),
            vmem_limit_bytes=vmem_limit,
            # allow XLA to fuse the im2col transpose / bf16 cast / K pad chain
            # directly into operand 0, skipping the materialized patch matrix
            allow_input_fusion=[True, False, False],
        ),
    )(patches, w_mat, b_mat)


# ----------------------------------------------------------------------------
# PatchEmbed module (functional)
# ----------------------------------------------------------------------------
def init_patch_embed_params(key, in_chans, embed_dim, patch_size):
    """Deterministic synthetic init for Conv2d(patch_size, stride=patch_size)."""
    kw, kb = jax.random.split(key)
    fan_in = in_chans * patch_size * patch_size
    bound = 1.0 / (fan_in ** 0.5)
    w = jax.random.uniform(kw, (embed_dim, in_chans, patch_size, patch_size),
                           jnp.float32, -bound, bound)
    b = jax.random.uniform(kb, (embed_dim,), jnp.float32, -bound, bound)
    return {"proj_w": w, "proj_b": b}


def prepare_patch_embed_params(params, *, compute_dtype=jnp.bfloat16):
    """One-time weight prep: (D,C,P,P) -> (K_pad, D_pad) bf16; bias -> (1, D_pad).

    Hoisted out of the per-call forward so the transpose/pad is not re-emitted
    every step.
    """
    w, b = params["proj_w"], params["proj_b"]
    D, C, P, _ = w.shape
    K = C * P * P
    K_pad = _round_up(K, 128)   # lane-dense loads; 192 -> 256 also fills MXU depth
    D_pad = _round_up(D, 128)   # lane-dense output stores
    w_mat = jnp.pad(w.reshape(D, K).T.astype(compute_dtype),
                    ((0, K_pad - K), (0, D_pad - D)))
    b_mat = jnp.pad(b.astype(jnp.float32), (0, D_pad - D)).reshape(1, D_pad)
    return {"w_mat": w_mat, "b_mat": b_mat}


def patch_embed_forward(prepared, x, *, patch_size, embed_dim,
                        compute_dtype=jnp.bfloat16, out_dtype=jnp.bfloat16):
    """x: (B, T, C, H, W) float32  ->  (tokens, T, Wp).

    tokens: (B*T, num_patches, embed_dim) in `out_dtype` (bf16 default; use
    jnp.float32 for exact dtype parity with the PyTorch module).
    """
    B, T, C, H, W = x.shape
    P = patch_size
    assert H % P == 0 and W % P == 0
    Hp, Wp = H // P, W // P
    num_patches = Hp * Wp
    D = embed_dim
    K = C * P * P
    K_pad, D_pad = prepared["w_mat"].shape
    assert K_pad == _round_up(K, 128) and D_pad == _round_up(D, 128)
    M = B * T * num_patches
    in_bytes = jnp.dtype(compute_dtype).itemsize
    out_bytes = jnp.dtype(out_dtype).itemsize

    # glue: permute(0,2,1,3,4) + 'b c t h w -> (b t) c h w' collapses to a reshape
    x_bt = x.reshape(B * T, C, H, W)

    # glue: im2col -> (M, K_pad) bf16.  With allow_input_fusion this chain is a
    # candidate to fuse into the pallas input DMA instead of materializing.
    patches = x_bt.reshape(B * T, C, Hp, P, Wp, P)
    patches = patches.transpose(0, 2, 4, 1, 3, 5)
    patches = patches.reshape(M, K).astype(compute_dtype)
    if K_pad != K:
        patches = jnp.pad(patches, ((0, 0), (0, K_pad - K)))

    # hot path: Pallas matmul + bias, VMEM-budgeted row tile
    tm, vmem_limit = _plan_tiles(M, K_pad, D_pad,
                                 in_bytes=in_bytes, out_bytes=out_bytes)
    out = _patch_proj(patches, prepared["w_mat"], prepared["b_mat"],
                      tm=tm, vmem_limit=vmem_limit, out_dtype=out_dtype)

    if D_pad != D:
        # TODO(synk): let the downstream consumer take the padded D_pad view to
        # avoid this extra read+write pass (only matters when embed_dim % 128 != 0).
        out = out[:, :D]
    # flatten(2).transpose(1,2) equivalent: (BT, num_patches, D)
    tokens = out.reshape(B * T, num_patches, D)
    return tokens, T, Wp


# ----------------------------------------------------------------------------
# Pure-JAX reference (same bf16-rounded operands, f32 accumulation)
# ----------------------------------------------------------------------------
def _reference(params, x, *, patch_size, compute_dtype=jnp.bfloat16):
    B, T, C, H, W = x.shape
    x_c = x.astype(compute_dtype).astype(jnp.float32)
    w_c = params["proj_w"].astype(compute_dtype).astype(jnp.float32)
    x_bt = x_c.reshape(B * T, C, H, W)
    out = jax.lax.conv_general_dilated(
        x_bt, w_c,
        window_strides=(patch_size, patch_size),
        padding="VALID",
        dimension_numbers=("NCHW", "OIHW", "NCHW"),
    ) + params["proj_b"][None, :, None, None]
    BT, D, Hp, Wp = out.shape
    tokens = out.reshape(BT, D, Hp * Wp).transpose(0, 2, 1)
    return tokens, T, Wp


if __name__ == "__main__":
    # Small shapes consistent with the module: B=2, T=2, C=3, H=W=16,
    # patch_size=8, embed_dim=32  ->  num_patches = 4, tokens (4, 4, 32).
    B, T, C, H, W = 2, 2, 3, 16, 16
    PATCH, EMBED = 8, 32

    key = jax.random.PRNGKey(0)
    kx, kp = jax.random.split(key)
    x = jax.random.normal(kx, (B, T, C, H, W), jnp.float32)
    params = init_patch_embed_params(kp, C, EMBED, PATCH)

    # one-time parameter preparation (outside the per-step hot path)
    prepared = prepare_patch_embed_params(params)

    fwd = jax.jit(functools.partial(patch_embed_forward,
                                    patch_size=PATCH, embed_dim=EMBED))
    tokens, t_out, w_out = fwd(prepared, x)
    tokens = jax.block_until_ready(tokens)

    ref_tokens, _, _ = _reference(params, x, patch_size=PATCH)
    assert tokens.shape == (B * T, (H // PATCH) * (W // PATCH), EMBED)
    assert int(t_out) == T and int(w_out) == W // PATCH
    err = float(jnp.max(jnp.abs(tokens.astype(jnp.float32) - ref_tokens)))
    # bf16 output rounding dominates the tolerance (values are O(1))
    assert err < 2e-2, err

    print("KERNEL_OK")
</pallas_src>

<mosaic_0001>
module attributes {stable_mosaic.version = 11 : i64} {
  func.func @_patch_proj_kernel(%arg0: i32, %arg1: memref<16x256xbf16, #tpu.memory_space<vmem>>, %arg2: memref<256x128xbf16, #tpu.memory_space<vmem>>, %arg3: memref<1x128xf32, #tpu.memory_space<vmem>>, %arg4: memref<16x128xbf16, #tpu.memory_space<vmem>>) attributes {dimension_semantics = [#tpu.dimension_semantics<parallel>], iteration_bounds = array<i64: 1>, scalar_prefetch = 0 : i64, scratch_operands = 0 : i64, tpu.core_type = #tpu.core_type<tc>, window_params = [{transform_indices = @transform_0, window_bounds = array<i64: 16, 256>}, {pipeline_mode = #tpu.pipeline_mode<synchronous>, transform_indices = @transform_1, window_bounds = array<i64: 256, 128>}, {pipeline_mode = #tpu.pipeline_mode<synchronous>, transform_indices = @transform_2, window_bounds = array<i64: 1, 128>}, {transform_indices = @transform_3, window_bounds = array<i64: 16, 128>}]} {
    %c0 = arith.constant 0 : index
    %c0_0 = arith.constant 0 : index
    %0 = vector.load %arg1[%c0, %c0_0] : memref<16x256xbf16, #tpu.memory_space<vmem>>, vector<16x256xbf16>
    %c0_1 = arith.constant 0 : index
    %c0_2 = arith.constant 0 : index
    %1 = vector.load %arg2[%c0_1, %c0_2] : memref<256x128xbf16, #tpu.memory_space<vmem>>, vector<256x128xbf16>
    %cst = arith.constant dense<0.000000e+00> : vector<16x128xf32>
    %2 = tpu.matmul %0, %1, %cst {dimension_numbers = #tpu.dot_dimension_numbers<[1], [0], [0], [1], [0, 0, 1, 1], [], []>} : vector<16x256xbf16>, vector<256x128xbf16>, vector<16x128xf32> -> vector<16x128xf32>
    %c0_3 = arith.constant 0 : index
    %c0_4 = arith.constant 0 : index
    %3 = vector.load %arg3[%c0_3, %c0_4] : memref<1x128xf32, #tpu.memory_space<vmem>>, vector<1x128xf32>
    %4 = vector.broadcast %3 : vector<1x128xf32> to vector<16x128xf32>
    %5 = arith.addf %2, %4 : vector<16x128xf32>
    %6 = arith.truncf %5 : vector<16x128xf32> to vector<16x128xbf16>
    %c0_5 = arith.constant 0 : index
    %c0_6 = arith.constant 0 : index
    %7 = vector.load %arg4[%c0_5, %c0_6] : memref<16x128xbf16, #tpu.memory_space<vmem>>, vector<16x128xbf16>
    tpu.vector_store %arg4[%c0_5, %c0_6], %6 {strides = array<i32>} : memref<16x128xbf16, #tpu.memory_space<vmem>>, vector<16x128xbf16>,
    return
  }
  func.func @transform_0(%arg0: i32) -> (i32, i32) {
    %c0_i32 = arith.constant 0 : i32
    %c0_i32_0 = arith.constant 0 : i32
    return %arg0, %c0_i32 : i32, i32
  }
  func.func @transform_1(%arg0: i32) -> (i32, i32) {
    %c0_i32 = arith.constant 0 : i32
    %c0_i32_0 = arith.constant 0 : i32
    %c0_i32_1 = arith.constant 0 : i32
    return %c0_i32, %c0_i32_0 : i32, i32
  }
  func.func @transform_2(%arg0: i32) -> (i32, i32) {
    %c0_i32 = arith.constant 0 : i32
    %c0_i32_0 = arith.constant 0 : i32
    %c0_i32_1 = arith.constant 0 : i32
    return %c0_i32, %c0_i32_0 : i32, i32
  }
  func.func @transform_3(%arg0: i32) -> (i32, i32) {
    %c0_i32 = arith.constant 0 : i32
    %c0_i32_0 = arith.constant 0 : i32
    return %arg0, %c0_i32 : i32, i32
  }
}

</mosaic_0001>

<llo_original>
// kernel: patch_embed_forward.2
$region0: #{patch_embed_forward.2}
  #allocation0 [shape = 'u32[]', space=smem, size = 0x4, offset = 0x4, fixed_abs, tag = 'smem constant byte address 0x4 - core index']
  #allocation1 [shape = 'u32[72,128]{1,0:T(1,128)}', space=vmem, size = 0x9000, scoped, tag = 'internal scratch']
  #allocation2 [shape = 'u32[2048]{0}', space=vmem, size = 0x2000, scoped, tag = 'scoped memory for patch_embed_forward.2']
  #allocation3 [shape = 'u32[2048]{0}', space=vmem, size = 0x2000, scoped, tag = 'scoped memory for patch_embed_forward.2']
  #allocation4 [shape = 'u32[2048]{0}', space=vmem, size = 0x2000, scoped, tag = 'scoped memory for patch_embed_forward.2']
  #allocation5 [shape = 'u32[2048]{0}', space=vmem, size = 0x2000, scoped, tag = 'scoped memory for patch_embed_forward.2']
  #allocation6 [shape = 'u32[2048]{0}', space=vmem, size = 0x2000, scoped, tag = 'scoped memory for patch_embed_forward.2']
  %s0 = inlined_call_operand.vmem [shape: bf16[256,128], index: 0, kind: input, shape index: {}]
  %s1 = inlined_call_operand.vmem [shape: f32[1,128], index: 1, kind: input, shape index: {}]
  %s2 = inlined_call_operand.vmem [shape: bf16[16,192], index: 2, kind: input, shape index: {}]
  %s3 = inlined_call_operand.<no memory space> [shape: bf16[], index: 3, kind: input, shape index: {}]
  %s4 = inlined_call_operand.hbm [shape: bf16[16,128], index: 4, kind: output, shape index: {}]
  %s5 = sld [smem:[#allocation0]]
  $region22: #{patch_embed_forward.2} parent=0
    _
  %s7 = ssub.s32 1, %s5
  %s8 = scalar_select 0, %s7, %s5
  %v9 = vstv %s3
  %v10 = vunpack.i.l.bf16 %v9
  %v12 = vunpack.i.h.bf16 %v9
  $region1: #{patch_embed_forward.2} parent=0
    #allocation7 [shape = 'u8[4096]{0}', space=vmem, size = 0x1000, scoped, tag = 'output window, operand 0, single buffered']
    #allocation8 [shape = 's32[1]{0}', space=sflag, size = 0x4, scoped, tag = 'scoped memory for patch_embed_forward.2']
    #allocation9 [shape = 'u8[8192]{0}', space=vmem, size = 0x2000, dematerialized = true, scoped, tag = 'FusionAdapter Buffer %fusion.1 = bf16[16,256]{1,0:T(8,128)(2,1)} fusion(%param_2.1, %param_3), kind=kLoop, calls=%fused_computation.2.clone, metadata={op_name="jit(patch_embed_forward)/jit(_pad)/pad" stack_frame_id=9}']
    %14 = vsyncpa [#allocation8], 0
    // Predicated region
    $region2: #{patch_embed_forward.2} parent=1 // pred_check
      _
    $region3: #{patch_embed_forward.2} parent=1 // pred_check_branch
      %16 = sbr.rel (0) target = $region5
    $region4: #{patch_embed_forward.2} parent=1 // pred_region
      _
    $region5: #{patch_embed_forward.2} parent=1 // pred_fallthru
      _
    // Predicated region
    $region6: #{patch_embed_forward.2} parent=1 // pred_check
      _
    $region7: #{patch_embed_forward.2} parent=1 // pred_check_branch
      %18 = sbr.rel (0) target = $region9
    $region8: #{patch_embed_forward.2} parent=1 // pred_region
      _
    $region9: #{patch_embed_forward.2} parent=1 // pred_fallthru
      _
    // Predicated region
    $region10: #{patch_embed_forward.2} parent=1 // pred_check
      _
    $region11: #{patch_embed_forward.2} parent=1 // pred_check_branch
      %20 = sbr.rel (0) target = $region13
    $region12: #{patch_embed_forward.2} parent=1 // pred_region
      _
    $region13: #{patch_embed_forward.2} parent=1 // pred_fallthru
      _
    %v21 = vld [vmem:[%s2] sm:$0xf]
    %v22 = vunpack.c.l.bf16 %v21
    %v23 = vunpack.c.h.bf16 %v21
    %v24 = vlaneseq
    %v25 = vand.u32 %v24, 127
    %vm27 = vcmp.lt.s32.totalorder %v25, 192
    %v28 = vsel %vm27, %v22, %v10
    %v29 = vpack.c.bf16 0.0, %v28
    %s31 = ssub.s32 16, 1
    %32 = vst [vmem:[#allocation9] sm:%s31] %v29
    %s33 = scalar_lea.vmem %s2, 4
    %s35 = sor.u32 255, 127
    %s36 = sand.u32 %s35, 85
    %s37 = sshrl.u32 %s36, 1
    %s38 = sor.u32 %s36, %s37
    %s39 = sand.u32 51, %s38
    %s40 = sshrl.u32 %s39, 2
    %s41 = sor.u32 %s39, %s40
    %s42 = sand.u32 15, %s41
    %v43 = vld [vmem:[%s33] sm:%s42]
    %v44 = vunpack.c.l.bf16 %v43
    %v45 = vunpack.c.h.bf16 %v43
    %v46 = vlaneseq
    %v47 = vand.u32 %v46, 127
    %v48 = vadd.s32 %v47, 128
    %vm49 = vcmp.lt.s32.totalorder %v48, 192
    %v50 = vsel %vm49, %v44, %v10
    %s51 = scalar_lea.vmem [#allocation9], 4
    %v52 = vpack.c.bf16 0.0, %v50
    %s54 = ssub.s32 16, 1
    %55 = vst [vmem:[%s51] sm:%s54] %v52
    %s56 = scalar_lea.vmem %s2, 8
    %v57 = vld [vmem:[%s56] sm:$0xf]
    %v58 = vunpack.c.l.bf16 %v57
    %v59 = vunpack.c.h.bf16 %v57
    %v60 = vlaneseq
    %v61 = vand.u32 %v60, 127
    %vm63 = vcmp.lt.s32.totalorder %v61, 192
    %v64 = vsel %vm63, %v58, %v10
    %s65 = scalar_lea.vmem [#allocation9], 8
    %v66 = vpack.c.bf16 0.0, %v64
    %s68 = ssub.s32 16, 1
    %69 = vst [vmem:[%s65] sm:%s68] %v66
    %s70 = scalar_lea.vmem %s2, 12
    %s72 = sor.u32 255, 127
    %s73 = sand.u32 %s72, 85
    %s74 = sshrl.u32 %s73, 1
    %s75 = sor.u32 %s73, %s74
    %s76 = sand.u32 51, %s75
    %s77 = sshrl.u32 %s76, 2
    %s78 = sor.u32 %s76, %s77
    %s79 = sand.u32 15, %s78
    %v80 = vld [vmem:[%s70] sm:%s79]
    %v81 = vunpack.c.l.bf16 %v80
    %v82 = vunpack.c.h.bf16 %v80
    %v83 = vlaneseq
    %v84 = vand.u32 %v83, 127
    %v85 = vadd.s32 %v84, 128
    %vm86 = vcmp.lt.s32.totalorder %v85, 192
    %v87 = vsel %vm86, %v81, %v10
    %s88 = scalar_lea.vmem [#allocation9], 12
    %v89 = vpack.c.bf16 0.0, %v87
    %s91 = ssub.s32 16, 1
    %92 = vst [vmem:[%s88] sm:%s91] %v89
    %v93 = vld [vmem:[#allocation9] sm:$0xff]
    %v94 = vld [vmem:[#allocation9 + $0x8] sm:$0xff]
    %v95 = vld [vmem:[%s0] sm:$0xf]
    %v96 = vld [vmem:[%s0 + $0x4] sm:$0xf]
    %v97 = vld [vmem:[%s0 + $0x8] sm:$0xf]
    %v98 = vld [vmem:[%s0 + $0xc] sm:$0xf]
    %v99 = vld [vmem:[%s0 + $0x10] sm:$0xf]
    %v100 = vld [vmem:[%s0 + $0x14] sm:$0xf]
    %v101 = vld [vmem:[%s0 + $0x18] sm:$0xf]
    %v102 = vld [vmem:[%s0 + $0x1c] sm:$0xf]
    %v103 = vld [vmem:[%s0 + $0x20] sm:$0xf]
    %v104 = vld [vmem:[%s0 + $0x24] sm:$0xf]
    %v105 = vld [vmem:[%s0 + $0x28] sm:$0xf]
    %v106 = vld [vmem:[%s0 + $0x2c] sm:$0xf]
    %v107 = vld [vmem:[%s0 + $0x30] sm:$0xf]
    %v108 = vld [vmem:[%s0 + $0x34] sm:$0xf]
    %v109 = vld [vmem:[%s0 + $0x38] sm:$0xf]
    %v110 = vld [vmem:[%s0 + $0x3c] sm:$0xf]
    %v111 = vld [vmem:[%s0 + $0x40] sm:$0xf]
    %v112 = vld [vmem:[%s0 + $0x44] sm:$0xf]
    %v113 = vld [vmem:[%s0 + $0x48] sm:$0xf]
    %v114 = vld [vmem:[%s0 + $0x4c] sm:$0xf]
    %v115 = vld [vmem:[%s0 + $0x50] sm:$0xf]
    %v116 = vld [vmem:[%s0 + $0x54] sm:$0xf]
    %v117 = vld [vmem:[%s0 + $0x58] sm:$0xf]
    %v118 = vld [vmem:[%s0 + $0x5c] sm:$0xf]
    %v119 = vld [vmem:[%s0 + $0x60] sm:$0xf]
    %v120 = vld [vmem:[%s0 + $0x64] sm:$0xf]
    %v121 = vld [vmem:[%s0 + $0x68] sm:$0xf]
    %v122 = vld [vmem:[%s0 + $0x6c] sm:$0xf]
    %v123 = vld [vmem:[%s0 + $0x70] sm:$0xf]
    %v124 = vld [vmem:[%s0 + $0x74] sm:$0xf]
    %v125 = vld [vmem:[%s0 + $0x78] sm:$0xf]
    %v126 = vld [vmem:[%s0 + $0x7c] sm:$0xf]
    %v127 = vld [vmem:[%s1] sm:$0x1]
    %v129 = vperm.slane %v127, 0
    %v133 = vunpack.c.l.b16 %v93
    %v134 = vunpack.c.h.b16 %v93
    %v135 = vunpack.c.l.b16 %v94
    %v136 = vunpack.c.h.b16 %v94
    %v137 = vpack.c.b16 %v135, %v133
    %v138 = vpack.c.b16 %v136, %v134
    %v173 = vunpack.c.l.b16 %v95
    %v174 = vunpack.c.l.b16 %v96
    %v175 = vunpack.c.l.b16 %v97
    %v176 = vunpack.c.l.b16 %v98
    %v177 = vunpack.c.l.b16 %v99
    %v178 = vunpack.c.l.b16 %v100
    %v179 = vunpack.c.l.b16 %v101
    %v180 = vunpack.c.l.b16 %v102
    %v181 = vunpack.c.l.b16 %v103
    %v182 = vunpack.c.l.b16 %v104
    %v183 = vunpack.c.l.b16 %v105
    %v184 = vunpack.c.l.b16 %v106
    %v185 = vunpack.c.l.b16 %v107
    %v186 = vunpack.c.l.b16 %v108
    %v187 = vunpack.c.l.b16 %v109
    %v188 = vunpack.c.l.b16 %v110
    %v189 = vunpack.c.l.b16 %v111
    %v190 = vunpack.c.l.b16 %v112
    %v191 = vunpack.c.l.b16 %v113
    %v192 = vunpack.c.l.b16 %v114
    %v193 = vunpack.c.l.b16 %v115
    %v194 = vunpack.c.l.b16 %v116
    %v195 = vunpack.c.l.b16 %v117
    %v196 = vunpack.c.l.b16 %v118
    %v197 = vunpack.c.l.b16 %v119
    %v198 = vunpack.c.l.b16 %v120
    %v199 = vunpack.c.l.b16 %v121
    %v200 = vunpack.c.l.b16 %v122
    %v201 = vunpack.c.l.b16 %v123
    %v202 = vunpack.c.l.b16 %v124
    %v203 = vunpack.c.l.b16 %v125
    %v204 = vunpack.c.l.b16 %v126
    %v205 = vpack.c.b16 %v174, %v173
    %v206 = vpack.c.b16 %v176, %v175
    %v207 = vpack.c.b16 %v178, %v177
    %v208 = vpack.c.b16 %v180, %v179
    %v209 = vpack.c.b16 %v182, %v181
    %v210 = vpack.c.b16 %v184, %v183
    %v211 = vpack.c.b16 %v186, %v185
    %v212 = vpack.c.b16 %v188, %v187
    %v213 = vpack.c.b16 %v190, %v189
    %v214 = vpack.c.b16 %v192, %v191
    %v215 = vpack.c.b16 %v194, %v193
    %v216 = vpack.c.b16 %v196, %v195
    %v217 = vpack.c.b16 %v198, %v197
    %v218 = vpack.c.b16 %v200, %v199
    %v219 = vpack.c.b16 %v202, %v201
    %v220 = vpack.c.b16 %v204, %v203
    %237 = vmatpush.bf16.msra.mxu0 %v212
    %238 = vmatpush.bf16.msra.mxu0 %v211
    %239 = vmatpush.bf16.msra.mxu0 %v210
    %240 = vmatpush.bf16.msra.mxu0 %v209
    %241 = vmatpush.bf16.msra.mxu0 %v208
    %242 = vmatpush.bf16.msra.mxu0 %v207
    %243 = vmatpush.bf16.msra.mxu0 %v206
    %244 = vmatpush.bf16.msra.mxu0 %v205
    %245 = vmatmul.bf16.gmra.mxu0 %v137
    %v246 = vpop.f32.mrf.mxu0
    %v247 = vadd.f32 %v129, %v246
    %v248 = vpop.f32.mrf.mxu0
    %v249 = vadd.f32 %v129, %v248
    %250 = vdwg.mxu0
    %251 = vmatpush.bf16.msra.mxu0 %v220
    %252 = vmatpush.bf16.msra.mxu0 %v219
    %253 = vmatpush.bf16.msra.mxu0 %v218
    %254 = vmatpush.bf16.msra.mxu0 %v217
    %255 = vmatpush.bf16.msra.mxu0 %v216
    %256 = vmatpush.bf16.msra.mxu0 %v215
    %257 = vmatpush.bf16.msra.mxu0 %v214
    %258 = vmatpush.bf16.msra.mxu0 %v213
    %259 = vmatmul.bf16.gmra.mxu0 %v138
    %v260 = vpop.f32.mrf.mxu0
    %v261 = vadd.f32 %v247, %v260
    %v262 = vpop.f32.mrf.mxu0
    %v263 = vadd.f32 %v249, %v262
    %264 = vdwg.mxu0
    %v265 = vpack.c.bf16 %v261, %v261
    %v266 = vpack.c.bf16 %v263, %v263
    %267 = vst [vmem:[#allocation7] sm:$0xf] %v265
    %268 = vst [vmem:[#allocation7 + $0x4] sm:$0xf] %v266
    // Predicated region
    $region14: #{patch_embed_forward.2} parent=1 // pred_check
      _
    $region15: #{patch_embed_forward.2} parent=1 // pred_check_branch
      %270 = sbr.rel (0) target = $region17
    $region16: #{patch_embed_forward.2} parent=1 // pred_region
      %272 = vsyncadd [#allocation8], 0
      %s273 = sshll.u32 [#allocation7], 4
      %s274 = int_to_ptr.vmem [resolvable:$true] %s273
      %s275 = sshll.u32 %s4, 4
      %s276 = int_to_ptr.hbm [resolvable:$true] %s275
      %281 = dma.vmem_to_hbm [thread:$0]  %s274, 128, %s276, [#allocation8], 64, 64, 4
    $region17: #{patch_embed_forward.2} parent=1 // pred_fallthru
      _
    // Predicated region
    $region18: #{patch_embed_forward.2} parent=1 // pred_check
      _
    $region19: #{patch_embed_forward.2} parent=1 // pred_check_branch
      %283 = sbr.rel (0) target = $region21
    $region20: #{patch_embed_forward.2} parent=1 // pred_region
      %285 = dma.done [#allocation8], 128
    $region21: #{patch_embed_forward.2} parent=1 // pred_fallthru
      _
    %286 = vsyncpa [#allocation8], 1

</llo_original>
